<compile_context>
chip_gen: v6e
topology: v6e:2x2x1
jax: 0.10.0
libtpu: 0.0.40
codegen_flags: <defaults>
</compile_context>

<pallas_src>
import functools

import jax
import jax.numpy as jnp
from jax.experimental import pallas as pl
from jax.experimental.pallas import tpu as pltpu


_PACK = 8  # batch rows folded into one lane-dense "super row"


def _phi_mlp_kernel(s_ref, a_ref, w1s_ref, w1a_ref, b1_ref, w2_ref, b2_ref,
                    w3_ref, b3_ref, o_ref):
    """Fused packed MLP: relu(relu(x@W1+b1)@W2+b2)@W3+b3 on 8-way packed rows.

    Weight refs hold 8-way block-diagonal copies of the original layer weights,
    so one packed row (= 8 batch rows laid out along lanes) flows through the
    whole MLP with no cross-lane data movement and no reshapes.
    """
    cd = w1s_ref.dtype  # matmul compute dtype (bf16 by default); f32 accumulate

    s = s_ref[...]
    a = a_ref[...]
    h = (jnp.dot(s.astype(cd), w1s_ref[...], preferred_element_type=jnp.float32)
         + jnp.dot(a.astype(cd), w1a_ref[...], preferred_element_type=jnp.float32)
         + b1_ref[...])
    h = jnp.maximum(h, 0.0)

    h = (jnp.dot(h.astype(cd), w2_ref[...], preferred_element_type=jnp.float32)
         + b2_ref[...])
    h = jnp.maximum(h, 0.0)

    z = (jnp.dot(h.astype(cd), w3_ref[...], preferred_element_type=jnp.float32)
         + b3_ref[...])
    o_ref[...] = z.astype(o_ref.dtype)


def _block_diag(w, n, dtype):
    """n-way block-diagonal expansion of w ([in, out] -> [n*in, n*out])."""
    return jnp.kron(jnp.eye(n, dtype=w.dtype), w).astype(dtype)


@functools.partial(jax.jit, static_argnames=("batch_tile", "compute_dtype"))
def phi_forward(current_state, current_action, params, *, batch_tile=512,
                compute_dtype=jnp.bfloat16):
    """Pallas-backed forward pass of Phi.

    current_state : (B, state_dim)  f32
    current_action: (B, action_dim) f32
    params        : dict w1,b1,w2,b2,w3,b3 with weights in [in, out] layout.
    """
    B, S = current_state.shape
    Ba, A = current_action.shape
    assert Ba == B
    w1, w2, w3 = params["w1"], params["w2"], params["w3"]
    b1 = params["b1"].reshape(1, -1)
    b2 = params["b2"].reshape(1, -1)
    b3 = params["b3"].reshape(1, -1)
    H = w1.shape[1]
    F = w3.shape[1]

    # Batch tile: multiple of PACK*8 (sublane constraint after packing), capped
    # at the rounded-up batch so small batches become a single full tile.
    unit = _PACK * 8
    tb = max(unit, (int(batch_tile) // unit) * unit)
    b_ceil = ((B + unit - 1) // unit) * unit
    tb = min(tb, b_ceil)
    num_tiles = (B + tb - 1) // tb          # static cdiv
    b_pad = num_tiles * tb
    if b_pad != B:                           # ragged batch -> zero-pad (static)
        pad = b_pad - B
        current_state = jnp.pad(current_state, ((0, pad), (0, 0)))
        current_action = jnp.pad(current_action, ((0, pad), (0, 0)))

    # Free, contiguous HBM reshapes: 8 batch rows -> one lane-dense super row.
    s_packed = current_state.reshape(b_pad // _PACK, _PACK * S)
    a_packed = current_action.reshape(b_pad // _PACK, _PACK * A)

    # One-time, tiny (<1 MiB) block-diagonal weight expansion; stays resident
    # in VMEM across grid steps (constant index_map -> no re-DMA).
    w1s_bd = _block_diag(w1[:S], _PACK, compute_dtype)     # (8S, 8H)
    w1a_bd = _block_diag(w1[S:], _PACK, compute_dtype)     # (8A, 8H)
    w2_bd = _block_diag(w2, _PACK, compute_dtype)          # (8H, 8H)
    w3_bd = _block_diag(w3, _PACK, compute_dtype)          # (8H, 8F)
    b1_t = jnp.tile(b1.astype(jnp.float32), (1, _PACK))    # (1, 8H)
    b2_t = jnp.tile(b2.astype(jnp.float32), (1, _PACK))    # (1, 8H)
    b3_t = jnp.tile(b3.astype(jnp.float32), (1, _PACK))    # (1, 8F)

    rows = tb // _PACK                                     # packed rows / tile
    const = lambda shape: pl.BlockSpec(shape, lambda i: (0, 0))

    out_packed = pl.pallas_call(
        _phi_mlp_kernel,
        out_shape=jax.ShapeDtypeStruct((b_pad // _PACK, _PACK * F), jnp.float32),
        grid_spec=pltpu.PrefetchScalarGridSpec(
            num_scalar_prefetch=0,
            grid=(num_tiles,),
            in_specs=[
                pl.BlockSpec((rows, _PACK * S), lambda i: (i, 0)),  # packed state
                pl.BlockSpec((rows, _PACK * A), lambda i: (i, 0)),  # packed action
                const((_PACK * S, _PACK * H)),                      # w1 (state part)
                const((_PACK * A, _PACK * H)),                      # w1 (action part)
                const((1, _PACK * H)),                              # b1
                const((_PACK * H, _PACK * H)),                      # w2
                const((1, _PACK * H)),                              # b2
                const((_PACK * H, _PACK * F)),                      # w3
                const((1, _PACK * F)),                              # b3
            ],
            out_specs=pl.BlockSpec((rows, _PACK * F), lambda i: (i, 0)),
        ),
        compiler_params=pltpu.CompilerParams(
            dimension_semantics=("parallel",),
            vmem_limit_bytes=32 * 1024 * 1024,
        ),
    )(s_packed, a_packed, w1s_bd, w1a_bd, b1_t, w2_bd, b2_t, w3_bd, b3_t)

    out = out_packed.reshape(b_pad, F)     # free reshape back to (B_pad, F)
    if b_pad != B:
        out = out[:B]
    return out


def init_phi_params(key, state_dim, action_dim, hidden_dim, feature_dim):
    """Deterministic synthetic init mimicking nn.Linear's U(-1/sqrt(fan_in), +)."""
    in_dim = state_dim + action_dim
    dims = [(in_dim, hidden_dim), (hidden_dim, hidden_dim),
            (hidden_dim, feature_dim)]
    params = {}
    for n, (fi, fo) in enumerate(dims, start=1):
        key, kw, kb = jax.random.split(key, 3)
        bound = 1.0 / jnp.sqrt(float(fi))
        params[f"w{n}"] = jax.random.uniform(
            kw, (fi, fo), jnp.float32, minval=-bound, maxval=bound)
        params[f"b{n}"] = jax.random.uniform(
            kb, (1, fo), jnp.float32, minval=-bound, maxval=bound)
    return params


def _phi_reference(state, action, params):
    """Pure-JAX reference (mirrors the PyTorch forward)."""
    x = jnp.concatenate([state, action], axis=-1)
    h = jnp.maximum(x @ params["w1"] + params["b1"], 0.0)
    h = jnp.maximum(h @ params["w2"] + params["b2"], 0.0)
    return h @ params["w3"] + params["b3"]


if __name__ == "__main__":
    # Small shapes consistent with Phi(state_dim, action_dim, hidden_dim,
    # feature_dim, hidden_depth=2); batch sized so the grid has >1 step.
    B = 1024
    state_dim, action_dim = 12, 4
    hidden_dim, feature_dim = 32, 16

    key = jax.random.PRNGKey(0)
    key, ks, ka, kp = jax.random.split(key, 4)
    current_state = jax.random.normal(ks, (B, state_dim), jnp.float32)
    current_action = jax.random.normal(ka, (B, action_dim), jnp.float32)
    params = init_phi_params(kp, state_dim, action_dim, hidden_dim, feature_dim)

    z_ref = _phi_reference(current_state, current_action, params)

    # f32 matmul path: tight numerical check of the packed / block-diag scheme.
    z32 = phi_forward(current_state, current_action, params,
                      compute_dtype=jnp.float32)
    z32 = jax.block_until_ready(z32)
    assert z32.shape == (B, feature_dim)
    assert jnp.allclose(z32, z_ref, atol=1e-3, rtol=1e-3)

    # Ragged batch: exercises the cdiv + padding path.
    Br = 100
    zr = phi_forward(current_state[:Br], current_action[:Br], params,
                     compute_dtype=jnp.float32)
    zr = jax.block_until_ready(zr)
    assert zr.shape == (Br, feature_dim)
    assert jnp.allclose(zr, z_ref[:Br], atol=1e-3, rtol=1e-3)

    # Default perf path: bf16 matmuls with f32 accumulation / bias / ReLU / out.
    z = phi_forward(current_state, current_action, params)
    z = jax.block_until_ready(z)
    assert z.shape == (B, feature_dim)
    assert jnp.allclose(z, z_ref, atol=1e-1, rtol=1e-1)

    print("KERNEL_OK")
</pallas_src>

<mosaic_0001>
module attributes {stable_mosaic.version = 11 : i64} {
  func.func @_phi_mlp_kernel(%arg0: i32, %arg1: memref<64x96xf32, #tpu.memory_space<vmem>>, %arg2: memref<64x32xf32, #tpu.memory_space<vmem>>, %arg3: memref<96x256xf32, #tpu.memory_space<vmem>>, %arg4: memref<32x256xf32, #tpu.memory_space<vmem>>, %arg5: memref<1x256xf32, #tpu.memory_space<vmem>>, %arg6: memref<256x256xf32, #tpu.memory_space<vmem>>, %arg7: memref<1x256xf32, #tpu.memory_space<vmem>>, %arg8: memref<256x128xf32, #tpu.memory_space<vmem>>, %arg9: memref<1x128xf32, #tpu.memory_space<vmem>>, %arg10: memref<64x128xf32, #tpu.memory_space<vmem>>) attributes {dimension_semantics = [#tpu.dimension_semantics<parallel>], iteration_bounds = array<i64: 2>, scalar_prefetch = 0 : i64, scratch_operands = 0 : i64, tpu.core_type = #tpu.core_type<tc>, window_params = [{transform_indices = @transform_0, window_bounds = array<i64: 64, 96>}, {transform_indices = @transform_1, window_bounds = array<i64: 64, 32>}, {pipeline_mode = #tpu.pipeline_mode<synchronous>, transform_indices = @transform_2, window_bounds = array<i64: 96, 256>}, {pipeline_mode = #tpu.pipeline_mode<synchronous>, transform_indices = @transform_3, window_bounds = array<i64: 32, 256>}, {pipeline_mode = #tpu.pipeline_mode<synchronous>, transform_indices = @transform_4, window_bounds = array<i64: 1, 256>}, {pipeline_mode = #tpu.pipeline_mode<synchronous>, transform_indices = @transform_5, window_bounds = array<i64: 256, 256>}, {pipeline_mode = #tpu.pipeline_mode<synchronous>, transform_indices = @transform_6, window_bounds = array<i64: 1, 256>}, {pipeline_mode = #tpu.pipeline_mode<synchronous>, transform_indices = @transform_7, window_bounds = array<i64: 256, 128>}, {pipeline_mode = #tpu.pipeline_mode<synchronous>, transform_indices = @transform_8, window_bounds = array<i64: 1, 128>}, {transform_indices = @transform_9, window_bounds = array<i64: 64, 128>}]} {
    %c0 = arith.constant 0 : index
    %c0_0 = arith.constant 0 : index
    %0 = vector.load %arg1[%c0, %c0_0] : memref<64x96xf32, #tpu.memory_space<vmem>>, vector<64x96xf32>
    %c0_1 = arith.constant 0 : index
    %c0_2 = arith.constant 0 : index
    %1 = vector.load %arg2[%c0_1, %c0_2] : memref<64x32xf32, #tpu.memory_space<vmem>>, vector<64x32xf32>
    %c0_3 = arith.constant 0 : index
    %c0_4 = arith.constant 0 : index
    %2 = vector.load %arg3[%c0_3, %c0_4] : memref<96x256xf32, #tpu.memory_space<vmem>>, vector<96x256xf32>
    %cst = arith.constant dense<0.000000e+00> : vector<64x256xf32>
    %3 = tpu.matmul %0, %2, %cst {dimension_numbers = #tpu.dot_dimension_numbers<[1], [0], [0], [1], [0, 0, 1, 1], [], []>} : vector<64x96xf32>, vector<96x256xf32>, vector<64x256xf32> -> vector<64x256xf32>
    %c0_5 = arith.constant 0 : index
    %c0_6 = arith.constant 0 : index
    %4 = vector.load %arg4[%c0_5, %c0_6] : memref<32x256xf32, #tpu.memory_space<vmem>>, vector<32x256xf32>
    %cst_7 = arith.constant dense<0.000000e+00> : vector<64x256xf32>
    %5 = tpu.matmul %1, %4, %cst_7 {dimension_numbers = #tpu.dot_dimension_numbers<[1], [0], [0], [1], [0, 0, 1, 1], [], []>} : vector<64x32xf32>, vector<32x256xf32>, vector<64x256xf32> -> vector<64x256xf32>
    %6 = arith.addf %3, %5 : vector<64x256xf32>
    %c0_8 = arith.constant 0 : index
    %c0_9 = arith.constant 0 : index
    %7 = vector.load %arg5[%c0_8, %c0_9] : memref<1x256xf32, #tpu.memory_space<vmem>>, vector<1x256xf32>
    %8 = vector.broadcast %7 : vector<1x256xf32> to vector<64x256xf32>
    %9 = arith.addf %6, %8 : vector<64x256xf32>
    %cst_10 = arith.constant 0.000000e+00 : f32
    %10 = vector.broadcast %cst_10 : f32 to vector<64x256xf32>
    %11 = arith.maximumf %9, %10 : vector<64x256xf32>
    %c0_11 = arith.constant 0 : index
    %c0_12 = arith.constant 0 : index
    %12 = vector.load %arg6[%c0_11, %c0_12] : memref<256x256xf32, #tpu.memory_space<vmem>>, vector<256x256xf32>
    %cst_13 = arith.constant dense<0.000000e+00> : vector<64x256xf32>
    %13 = tpu.matmul %11, %12, %cst_13 {dimension_numbers = #tpu.dot_dimension_numbers<[1], [0], [0], [1], [0, 0, 1, 1], [], []>} : vector<64x256xf32>, vector<256x256xf32>, vector<64x256xf32> -> vector<64x256xf32>
    %c0_14 = arith.constant 0 : index
    %c0_15 = arith.constant 0 : index
    %14 = vector.load %arg7[%c0_14, %c0_15] : memref<1x256xf32, #tpu.memory_space<vmem>>, vector<1x256xf32>
    %15 = vector.broadcast %14 : vector<1x256xf32> to vector<64x256xf32>
    %16 = arith.addf %13, %15 : vector<64x256xf32>
    %cst_16 = arith.constant 0.000000e+00 : f32
    %17 = vector.broadcast %cst_16 : f32 to vector<64x256xf32>
    %18 = arith.maximumf %16, %17 : vector<64x256xf32>
    %c0_17 = arith.constant 0 : index
    %c0_18 = arith.constant 0 : index
    %19 = vector.load %arg8[%c0_17, %c0_18] : memref<256x128xf32, #tpu.memory_space<vmem>>, vector<256x128xf32>
    %cst_19 = arith.constant dense<0.000000e+00> : vector<64x128xf32>
    %20 = tpu.matmul %18, %19, %cst_19 {dimension_numbers = #tpu.dot_dimension_numbers<[1], [0], [0], [1], [0, 0, 1, 1], [], []>} : vector<64x256xf32>, vector<256x128xf32>, vector<64x128xf32> -> vector<64x128xf32>
    %c0_20 = arith.constant 0 : index
    %c0_21 = arith.constant 0 : index
    %21 = vector.load %arg9[%c0_20, %c0_21] : memref<1x128xf32, #tpu.memory_space<vmem>>, vector<1x128xf32>
    %22 = vector.broadcast %21 : vector<1x128xf32> to vector<64x128xf32>
    %23 = arith.addf %20, %22 : vector<64x128xf32>
    %c0_22 = arith.constant 0 : index
    %c0_23 = arith.constant 0 : index
    %24 = vector.load %arg10[%c0_22, %c0_23] : memref<64x128xf32, #tpu.memory_space<vmem>>, vector<64x128xf32>
    tpu.vector_store %arg10[%c0_22, %c0_23], %23 {strides = array<i32>} : memref<64x128xf32, #tpu.memory_space<vmem>>, vector<64x128xf32>,
    return
  }
  func.func @transform_0(%arg0: i32) -> (i32, i32) {
    %c0_i32 = arith.constant 0 : i32
    %c0_i32_0 = arith.constant 0 : i32
    return %arg0, %c0_i32 : i32, i32
  }
  func.func @transform_1(%arg0: i32) -> (i32, i32) {
    %c0_i32 = arith.constant 0 : i32
    %c0_i32_0 = arith.constant 0 : i32
    return %arg0, %c0_i32 : i32, i32
  }
  func.func @transform_2(%arg0: i32) -> (i32, i32) {
    %c0_i32 = arith.constant 0 : i32
    %c0_i32_0 = arith.constant 0 : i32
    %c0_i32_1 = arith.constant 0 : i32
    return %c0_i32, %c0_i32_0 : i32, i32
  }
  func.func @transform_3(%arg0: i32) -> (i32, i32) {
    %c0_i32 = arith.constant 0 : i32
    %c0_i32_0 = arith.constant 0 : i32
    %c0_i32_1 = arith.constant 0 : i32
    return %c0_i32, %c0_i32_0 : i32, i32
  }
  func.func @transform_4(%arg0: i32) -> (i32, i32) {
    %c0_i32 = arith.constant 0 : i32
    %c0_i32_0 = arith.constant 0 : i32
    %c0_i32_1 = arith.constant 0 : i32
    return %c0_i32, %c0_i32_0 : i32, i32
  }
  func.func @transform_5(%arg0: i32) -> (i32, i32) {
    %c0_i32 = arith.constant 0 : i32
    %c0_i32_0 = arith.constant 0 : i32
    %c0_i32_1 = arith.constant 0 : i32
    return %c0_i32, %c0_i32_0 : i32, i32
  }
  func.func @transform_6(%arg0: i32) -> (i32, i32) {
    %c0_i32 = arith.constant 0 : i32
    %c0_i32_0 = arith.constant 0 : i32
    %c0_i32_1 = arith.constant 0 : i32
    return %c0_i32, %c0_i32_0 : i32, i32
  }
  func.func @transform_7(%arg0: i32) -> (i32, i32) {
    %c0_i32 = arith.constant 0 : i32
    %c0_i32_0 = arith.constant 0 : i32
    %c0_i32_1 = arith.constant 0 : i32
    return %c0_i32, %c0_i32_0 : i32, i32
  }
  func.func @transform_8(%arg0: i32) -> (i32, i32) {
    %c0_i32 = arith.constant 0 : i32
    %c0_i32_0 = arith.constant 0 : i32
    %c0_i32_1 = arith.constant 0 : i32
    return %c0_i32, %c0_i32_0 : i32, i32
  }
  func.func @transform_9(%arg0: i32) -> (i32, i32) {
    %c0_i32 = arith.constant 0 : i32
    %c0_i32_0 = arith.constant 0 : i32
    return %arg0, %c0_i32 : i32, i32
  }
}

</mosaic_0001>

<llo_original>
// kernel: phi_forward.1
$region0: #{phi_forward.1}
  #allocation0 [shape = 'u32[]', space=smem, size = 0x4, offset = 0x4, fixed_abs, tag = 'smem constant byte address 0x4 - core index']
  #allocation1 [shape = 'u32[144,128]{1,0:T(1,128)}', space=vmem, size = 0x12000, scoped, tag = 'internal scratch']
  %s0 = inlined_call_operand.vmem [shape: f32[128,96], index: 0, kind: input, shape index: {}]
  %s1 = inlined_call_operand.vmem [shape: f32[128,32], index: 1, kind: input, shape index: {}]
  %s2 = inlined_call_operand.vmem [shape: f32[96,256], index: 2, kind: input, shape index: {}]
  %s3 = inlined_call_operand.vmem [shape: f32[32,256], index: 3, kind: input, shape index: {}]
  %s4 = inlined_call_operand.vmem [shape: f32[1,256], index: 4, kind: input, shape index: {}]
  %s5 = inlined_call_operand.vmem [shape: f32[256,256], index: 5, kind: input, shape index: {}]
  %s6 = inlined_call_operand.vmem [shape: f32[1,256], index: 6, kind: input, shape index: {}]
  %s7 = inlined_call_operand.vmem [shape: f32[256,128], index: 7, kind: input, shape index: {}]
  %s8 = inlined_call_operand.vmem [shape: f32[1,128], index: 8, kind: input, shape index: {}]
  %s9 = inlined_call_operand.vmem [shape: f32[128,128], index: 9, kind: output, shape index: {}]
  %s10 = sld [smem:[#allocation0]]
  $region69: #{phi_forward.1} parent=0
    _
  %s12 = ssub.s32 1, %s10
  %s13 = scalar_select 0, %s12, %s10
  loop: start=0, step=1, limit=4
  $region2: #{phi_forward.1} parent=0 // loop_pre_header
    _
  $region3: #{phi_forward.1} parent=0 // loop_header
    %s15 = sphi 0, %s19
    %p16 = scmp.ge.s32.totalorder %s15, 4
    %s25 = sphi 0, %s27
    %s28 = sphi 0, %s25
    %s29 = sphi 0, %s28
    %s45 = sphi 0, %s29
    %s51 = sphi 0, %s53
    %s54 = sphi 0, %s51
    %s55 = sphi 0, %s54
    %s71 = sphi 0, %s55
    %s75 = sphi 0, %s75
    %s77 = sphi 0, %s75
    %s78 = sphi 0, %s77
    %s92 = sphi 0, %s78
    %s96 = sphi 0, %s96
    %s98 = sphi 0, %s96
    %s99 = sphi 0, %s98
    %s113 = sphi 0, %s99
    %s117 = sphi 0, %s117
    %s119 = sphi 0, %s117
    %s120 = sphi 0, %s119
    %s134 = sphi 0, %s120
    %s138 = sphi 0, %s138
    %s140 = sphi 0, %s138
    %s141 = sphi 0, %s140
    %s155 = sphi 0, %s141
    %s159 = sphi 0, %s159
    %s161 = sphi 0, %s159
    %s162 = sphi 0, %s161
    %s176 = sphi 0, %s162
    %s180 = sphi 0, %s180
    %s182 = sphi 0, %s180
    %s183 = sphi 0, %s182
    %s197 = sphi 0, %s183
    %s201 = sphi 0, %s201
    %s203 = sphi 0, %s201
    %s204 = sphi 0, %s203
    %s218 = sphi 0, %s204
    %s224 = sphi 0, %s226
    %s227 = sphi 0, %s224
    %s228 = sphi 0, %s227
    %s244 = sphi 0, %s228
  $region4: #{phi_forward.1} parent=0 // loop_header_branch
    %18 = sbr.rel (%p16) target = $region8
  $region5: #{phi_forward.1} parent=0 // loop_body
    %s20 = ssub.s32 %s15, 1
    %s21 = ssub.s32 %s15, 2
    %s22 = sadd.s32 %s15, 1
    %s23 = ssub.s32 %s15, %s22
    %p24 = scmp.eq.s32.totalorder %s23, 0
    %s26 = sadd.s32 %s25, 1
    %s27 = scalar_select %p24, %s25, %s26
    %p30 = pneg %p24
    %p31 = scmp.eq.s32.totalorder %s15, 1
    %p32 = por %p30, %p31
    %p33 = scmp.ne.s32.totalorder %s25, %s28
    %p34 = scmp.eq.s32.totalorder %s15, 0
    %p35 = por %p33, %p34
    %p36 = scmp.ne.s32.totalorder %s25, %s28
    %p37 = scmp.eq.s32.totalorder %s20, 1
    %p38 = por %p36, %p37
    %p39 = scmp.ne.s32.totalorder %s28, %s29
    %p40 = scmp.eq.s32.totalorder %s20, 0
    %p41 = por %p39, %p40
    %p42 = scmp.ne.s32.totalorder %s28, %s29
    %p43 = scmp.eq.s32.totalorder %s21, 1
    %p44 = por %p42, %p43
    %p46 = scmp.ne.s32.totalorder %s29, %s45
    %p47 = scmp.eq.s32.totalorder %s21, 0
    %p48 = por %p46, %p47
    %s49 = ssub.s32 %s15, %s22
    %p50 = scmp.eq.s32.totalorder %s49, 0
    %s52 = sadd.s32 %s51, 1
    %s53 = scalar_select %p50, %s51, %s52
    %p56 = pneg %p50
    %p57 = scmp.eq.s32.totalorder %s15, 1
    %p58 = por %p56, %p57
    %p59 = scmp.ne.s32.totalorder %s51, %s54
    %p60 = scmp.eq.s32.totalorder %s15, 0
    %p61 = por %p59, %p60
    %p62 = scmp.ne.s32.totalorder %s51, %s54
    %p63 = scmp.eq.s32.totalorder %s20, 1
    %p64 = por %p62, %p63
    %p65 = scmp.ne.s32.totalorder %s54, %s55
    %p66 = scmp.eq.s32.totalorder %s20, 0
    %p67 = por %p65, %p66
    %p68 = scmp.ne.s32.totalorder %s54, %s55
    %p69 = scmp.eq.s32.totalorder %s21, 1
    %p70 = por %p68, %p69
    %p72 = scmp.ne.s32.totalorder %s55, %s71
    %p73 = scmp.eq.s32.totalorder %s21, 0
    %p74 = por %p72, %p73
    %s76 = sadd.s32 %s75, 1
    %p79 = scmp.eq.s32.totalorder %s15, 1
    %p80 = scmp.ne.s32.totalorder %s75, %s77
    %p81 = scmp.eq.s32.totalorder %s15, 0
    %p82 = por %p80, %p81
    %p83 = scmp.ne.s32.totalorder %s75, %s77
    %p84 = scmp.eq.s32.totalorder %s20, 1
    %p85 = por %p83, %p84
    %p86 = scmp.ne.s32.totalorder %s77, %s78
    %p87 = scmp.eq.s32.totalorder %s20, 0
    %p88 = por %p86, %p87
    %p89 = scmp.ne.s32.totalorder %s77, %s78
    %p90 = scmp.eq.s32.totalorder %s21, 1
    %p91 = por %p89, %p90
    %p93 = scmp.ne.s32.totalorder %s78, %s92
    %p94 = scmp.eq.s32.totalorder %s21, 0
    %p95 = por %p93, %p94
    %s97 = sadd.s32 %s96, 1
    %p100 = scmp.eq.s32.totalorder %s15, 1
    %p101 = scmp.ne.s32.totalorder %s96, %s98
    %p102 = scmp.eq.s32.totalorder %s15, 0
    %p103 = por %p101, %p102
    %p104 = scmp.ne.s32.totalorder %s96, %s98
    %p105 = scmp.eq.s32.totalorder %s20, 1
    %p106 = por %p104, %p105
    %p107 = scmp.ne.s32.totalorder %s98, %s99
    %p108 = scmp.eq.s32.totalorder %s20, 0
    %p109 = por %p107, %p108
    %p110 = scmp.ne.s32.totalorder %s98, %s99
    %p111 = scmp.eq.s32.totalorder %s21, 1
    %p112 = por %p110, %p111
    %p114 = scmp.ne.s32.totalorder %s99, %s113
    %p115 = scmp.eq.s32.totalorder %s21, 0
    %p116 = por %p114, %p115
    %s118 = sadd.s32 %s117, 1
    %p121 = scmp.eq.s32.totalorder %s15, 1
    %p122 = scmp.ne.s32.totalorder %s117, %s119
    %p123 = scmp.eq.s32.totalorder %s15, 0
    %p124 = por %p122, %p123
    %p125 = scmp.ne.s32.totalorder %s117, %s119
    %p126 = scmp.eq.s32.totalorder %s20, 1
    %p127 = por %p125, %p126
    %p128 = scmp.ne.s32.totalorder %s119, %s120
    %p129 = scmp.eq.s32.totalorder %s20, 0
    %p130 = por %p128, %p129
    %p131 = scmp.ne.s32.totalorder %s119, %s120
    %p132 = scmp.eq.s32.totalorder %s21, 1
    %p133 = por %p131, %p132
    %p135 = scmp.ne.s32.totalorder %s120, %s134
    %p136 = scmp.eq.s32.totalorder %s21, 0
    %p137 = por %p135, %p136
    %s139 = sadd.s32 %s138, 1
    %p142 = scmp.eq.s32.totalorder %s15, 1
    %p143 = scmp.ne.s32.totalorder %s138, %s140
    %p144 = scmp.eq.s32.totalorder %s15, 0
    %p145 = por %p143, %p144
    %p146 = scmp.ne.s32.totalorder %s138, %s140
    %p147 = scmp.eq.s32.totalorder %s20, 1
    %p148 = por %p146, %p147
    %p149 = scmp.ne.s32.totalorder %s140, %s141
    %p150 = scmp.eq.s32.totalorder %s20, 0
    %p151 = por %p149, %p150
    %p152 = scmp.ne.s32.totalorder %s140, %s141
    %p153 = scmp.eq.s32.totalorder %s21, 1
    %p154 = por %p152, %p153
    %p156 = scmp.ne.s32.totalorder %s141, %s155
    %p157 = scmp.eq.s32.totalorder %s21, 0
    %p158 = por %p156, %p157
    %s160 = sadd.s32 %s159, 1
    %p163 = scmp.eq.s32.totalorder %s15, 1
    %p164 = scmp.ne.s32.totalorder %s159, %s161
    %p165 = scmp.eq.s32.totalorder %s15, 0
    %p166 = por %p164, %p165
    %p167 = scmp.ne.s32.totalorder %s159, %s161
    %p168 = scmp.eq.s32.totalorder %s20, 1
    %p169 = por %p167, %p168
    %p170 = scmp.ne.s32.totalorder %s161, %s162
    %p171 = scmp.eq.s32.totalorder %s20, 0
    %p172 = por %p170, %p171
    %p173 = scmp.ne.s32.totalorder %s161, %s162
    %p174 = scmp.eq.s32.totalorder %s21, 1
    %p175 = por %p173, %p174
    %p177 = scmp.ne.s32.totalorder %s162, %s176
    %p178 = scmp.eq.s32.totalorder %s21, 0
    %p179 = por %p177, %p178
    %s181 = sadd.s32 %s180, 1
    %p184 = scmp.eq.s32.totalorder %s15, 1
    %p185 = scmp.ne.s32.totalorder %s180, %s182
    %p186 = scmp.eq.s32.totalorder %s15, 0
    %p187 = por %p185, %p186
    %p188 = scmp.ne.s32.totalorder %s180, %s182
    %p189 = scmp.eq.s32.totalorder %s20, 1
    %p190 = por %p188, %p189
    %p191 = scmp.ne.s32.totalorder %s182, %s183
    %p192 = scmp.eq.s32.totalorder %s20, 0
    %p193 = por %p191, %p192
    %p194 = scmp.ne.s32.totalorder %s182, %s183
    %p195 = scmp.eq.s32.totalorder %s21, 1
    %p196 = por %p194, %p195
    %p198 = scmp.ne.s32.totalorder %s183, %s197
    %p199 = scmp.eq.s32.totalorder %s21, 0
    %p200 = por %p198, %p199
    %s202 = sadd.s32 %s201, 1
    %p205 = scmp.eq.s32.totalorder %s15, 1
    %p206 = scmp.ne.s32.totalorder %s201, %s203
    %p207 = scmp.eq.s32.totalorder %s15, 0
    %p208 = por %p206, %p207
    %p209 = scmp.ne.s32.totalorder %s201, %s203
    %p210 = scmp.eq.s32.totalorder %s20, 1
    %p211 = por %p209, %p210
    %p212 = scmp.ne.s32.totalorder %s203, %s204
    %p213 = scmp.eq.s32.totalorder %s20, 0
    %p214 = por %p212, %p213
    %p215 = scmp.ne.s32.totalorder %s203, %s204
    %p216 = scmp.eq.s32.totalorder %s21, 1
    %p217 = por %p215, %p216
    %p219 = scmp.ne.s32.totalorder %s204, %s218
    %p220 = scmp.eq.s32.totalorder %s21, 0
    %p221 = por %p219, %p220
    %s222 = ssub.s32 %s15, %s22
    %p223 = scmp.eq.s32.totalorder %s222, 0
    %s225 = sadd.s32 %s224, 1
    %s226 = scalar_select %p223, %s224, %s225
    %p229 = pneg %p223
    %p230 = scmp.eq.s32.totalorder %s15, 1
    %p231 = por %p229, %p230
    %p232 = scmp.ne.s32.totalorder %s224, %s227
    %p233 = scmp.eq.s32.totalorder %s15, 0
    %p234 = por %p232, %p233
    %p235 = scmp.ne.s32.totalorder %s224, %s227
    %p236 = scmp.eq.s32.totalorder %s20, 1
    %p237 = por %p235, %p236
    %p238 = scmp.ne.s32.totalorder %s227, %s228
    %p239 = scmp.eq.s32.totalorder %s20, 0
    %p240 = por %p238, %p239
    %p241 = scmp.ne.s32.totalorder %s227, %s228
    %p242 = scmp.eq.s32.totalorder %s21, 1
    %p243 = por %p241, %p242
    %p245 = scmp.ne.s32.totalorder %s228, %s244
    %p246 = scmp.eq.s32.totalorder %s21, 0
    %p247 = por %p245, %p246
    %p248 = scmp.le.s32.totalorder 1, %s15
    %p249 = scmp.lt.s32.totalorder %s15, 3
    %p250 = pnand %p248, %p249
    %p251 = pneg %p250
    // Predicated region
    $region9: #{phi_forward.1} parent=5 // pred_check
      _
    $region10: #{phi_forward.1} parent=5 // pred_check_branch
      %253 = sbr.rel (%p250) target = $region12
    $region11: #{phi_forward.1} parent=5 // pred_region
      %s254 = ssub.s32 %s15, 1
      // Predicated region
      $region13: #{phi_forward.1} parent=11 // pred_check
        %p255 = pneg %p88
      $region14: #{phi_forward.1} parent=11 // pred_check_branch
        %257 = sbr.rel (%p255) target = $region16
      $region15: #{phi_forward.1} parent=11 // pred_region
        _
      $region16: #{phi_forward.1} parent=11 // pred_fallthru
        _
      // Predicated region
      $region17: #{phi_forward.1} parent=11 // pred_check
        %p258 = pneg %p109
      $region18: #{phi_forward.1} parent=11 // pred_check_branch
        %260 = sbr.rel (%p258) target = $region20
      $region19: #{phi_forward.1} parent=11 // pred_region
        _
      $region20: #{phi_forward.1} parent=11 // pred_fallthru
        _
      // Predicated region
      $region21: #{phi_forward.1} parent=11 // pred_check
        %p261 = pneg %p130
      $region22: #{phi_forward.1} parent=11 // pred_check_branch
        %263 = sbr.rel (%p261) target = $region24
      $region23: #{phi_forward.1} parent=11 // pred_region
        _
      $region24: #{phi_forward.1} parent=11 // pred_fallthru
        _
      // Predicated region
      $region25: #{phi_forward.1} parent=11 // pred_check
        %p264 = pneg %p151
      $region26: #{phi_forward.1} parent=11 // pred_check_branch
        %266 = sbr.rel (%p264) target = $region28
      $region27: #{phi_forward.1} parent=11 // pred_region
        _
      $region28: #{phi_forward.1} parent=11 // pred_fallthru
        _
      // Predicated region
      $region29: #{phi_forward.1} parent=11 // pred_check
        %p267 = pneg %p172
      $region30: #{phi_forward.1} parent=11 // pred_check_branch
        %269 = sbr.rel (%p267) target = $region32
      $region31: #{phi_forward.1} parent=11 // pred_region
        _
      $region32: #{phi_forward.1} parent=11 // pred_fallthru
        _
      // Predicated region
      $region33: #{phi_forward.1} parent=11 // pred_check
        %p270 = pneg %p193
      $region34: #{phi_forward.1} parent=11 // pred_check_branch
        %272 = sbr.rel (%p270) target = $region36
      $region35: #{phi_forward.1} parent=11 // pred_region
        _
      $region36: #{phi_forward.1} parent=11 // pred_fallthru
        _
      // Predicated region
      $region37: #{phi_forward.1} parent=11 // pred_check
        %p273 = pneg %p214
      $region38: #{phi_forward.1} parent=11 // pred_check_branch
        %275 = sbr.rel (%p273) target = $region40
      $region39: #{phi_forward.1} parent=11 // pred_region
        _
      $region40: #{phi_forward.1} parent=11 // pred_fallthru
        _
    $region12: #{phi_forward.1} parent=5 // pred_fallthru
      _
    %p276 = scmp.lt.s32.totalorder %s15, 2
    // Predicated region
    $region41: #{phi_forward.1} parent=5 // pred_check
      %p277 = pneg %p276
    $region42: #{phi_forward.1} parent=5 // pred_check_branch
      %279 = sbr.rel (%p277) target = $region44
    $region43: #{phi_forward.1} parent=5 // pred_region
      // Predicated region
      $region45: #{phi_forward.1} parent=43 // pred_check
        %p280 = pneg %p35
      $region46: #{phi_forward.1} parent=43 // pred_check_branch
        %282 = sbr.rel (%p280) target = $region48
      $region47: #{phi_forward.1} parent=43 // pred_region
        %s283 = smul.u32 8, %s15
        %p284 = scmp.lt.s32.totalorder %s283, 15
        %s285 = scalar_select %p284, %s283, 15
        %s286 = smul.addr %s285, 8
        %s287 = scalar_lea.vmem %s0, %s286
        %s288 = smul.u32 8, %s15
      $region48: #{phi_forward.1} parent=43 // pred_fallthru
        _
      // Predicated region
      $region49: #{phi_forward.1} parent=43 // pred_check
        %p289 = pneg %p61
      $region50: #{phi_forward.1} parent=43 // pred_check_branch
        %291 = sbr.rel (%p289) target = $region52
      $region51: #{phi_forward.1} parent=43 // pred_region
        %s292 = smul.u32 8, %s15
        %p293 = scmp.lt.s32.totalorder %s292, 15
        %s294 = scalar_select %p293, %s292, 15
        %s295 = smul.addr %s294, 8
        %s296 = scalar_lea.vmem %s1, %s295
        %s297 = smul.u32 8, %s15
      $region52: #{phi_forward.1} parent=43 // pred_fallthru
        _
    $region44: #{phi_forward.1} parent=5 // pred_fallthru
      _
    %p298 = scmp.le.s32.totalorder 1, %s15
    %p299 = scmp.lt.s32.totalorder %s15, 3
    %p300 = pnand %p298, %p299
    %p301 = pneg %p300
    // Predicated region
    $region53: #{phi_forward.1} parent=5 // pred_check
      _
    $region54: #{phi_forward.1} parent=5 // pred_check_branch
      %303 = sbr.rel (%p300) target = $region56
    $region55: #{phi_forward.1} parent=5 // pred_region
      %s304 = ssub.s32 %s15, 1
      %s305 = smul.u32 8, %s20
      %p306 = scmp.lt.s32.totalorder %s305, 15
      %s307 = scalar_select %p306, %s305, 15
      %s308 = smul.addr %s307, 8
      %s309 = scalar_lea.vmem %s0, %s308
      %p310 = pneg %p41
      %p311 = pneg %p38
      %s312 = smul.u32 8, %s20
      %p313 = scmp.lt.s32.totalorder %s312, 15
      %s314 = scalar_select %p313, %s312, 15
      %s315 = smul.addr %s314, 8
      %s316 = scalar_lea.vmem %s1, %s315
      %p317 = pneg %p67
      %p318 = pneg %p64
      %p319 = pneg %p88
      %p320 = pneg %p85
      %p321 = pneg %p109
      %p322 = pneg %p106
      %p323 = pneg %p130
      %p324 = pneg %p127
      %p325 = pneg %p151
      %p326 = pneg %p148
      %p327 = pneg %p172
      %p328 = pneg %p169
      %p329 = pneg %p193
      %p330 = pneg %p190
      %p331 = pneg %p214
      %p332 = pneg %p211
      %p333 = pneg %p240
      %p334 = pneg %p237
      %s335 = smul.u32 8, %s20
      %p336 = scmp.lt.s32.totalorder %s335, 15
      %s337 = scalar_select %p336, %s335, 15
      %s338 = smul.addr %s337, 8
      %s339 = scalar_lea.vmem %s9, %s338
      %s340 = smul.u32 8, %s20
      %p341 = scmp.lt.s32.totalorder %s340, 15
      %s342 = scalar_select %p341, %s340, 15
      %s343 = smul.addr %s342, 8
      %s344 = scalar_lea.vmem %s0, %s343
      %s345 = smul.u32 8, %s20
      %s346 = smul.u32 8, %s20
      %p347 = scmp.lt.s32.totalorder %s346, 15
      %s348 = scalar_select %p347, %s346, 15
      %s349 = smul.addr %s348, 8
      %s350 = scalar_lea.vmem %s1, %s349
      %s351 = smul.u32 8, %s20
      %s352 = smul.u32 8, %s20
      %p353 = scmp.lt.s32.totalorder %s352, 15
      %s354 = scalar_select %p353, %s352, 15
      %s355 = smul.addr %s354, 8
      %s356 = scalar_lea.vmem %s9, %s355
      %s357 = smul.u32 8, %s20
      %v358 = vld [vmem:[%s344] sm:$0xff]
      %v359 = vld [vmem:[%s344 + $0x8] sm:$0xff]
      %v360 = vld [vmem:[%s344 + $0x10] sm:$0xff]
      %v361 = vld [vmem:[%s344 + $0x18] sm:$0xff]
      %v362 = vld [vmem:[%s344 + $0x20] sm:$0xff]
      %v363 = vld [vmem:[%s344 + $0x28] sm:$0xff]
      %v364 = vld [vmem:[%s344 + $0x30] sm:$0xff]
      %v365 = vld [vmem:[%s344 + $0x38] sm:$0xff]
      %v366 = vld [vmem:[%s350] sm:$0xff]
      %v367 = vld [vmem:[%s350 + $0x8] sm:$0xff]
      %v368 = vld [vmem:[%s350 + $0x10] sm:$0xff]
      %v369 = vld [vmem:[%s350 + $0x18] sm:$0xff]
      %v370 = vld [vmem:[%s350 + $0x20] sm:$0xff]
      %v371 = vld [vmem:[%s350 + $0x28] sm:$0xff]
      %v372 = vld [vmem:[%s350 + $0x30] sm:$0xff]
      %v373 = vld [vmem:[%s350 + $0x38] sm:$0xff]
      %v374 = vld [vmem:[%s2] sm:$0xff]
      %v375 = vld [vmem:[%s2 + $0x8] sm:$0xff]
      %v376 = vld [vmem:[%s2 + $0x10] sm:$0xff]
      %v377 = vld [vmem:[%s2 + $0x18] sm:$0xff]
      %v378 = vld [vmem:[%s2 + $0x20] sm:$0xff]
      %v379 = vld [vmem:[%s2 + $0x28] sm:$0xff]
      %v380 = vld [vmem:[%s2 + $0x30] sm:$0xff]
      %v381 = vld [vmem:[%s2 + $0x38] sm:$0xff]
      %v382 = vld [vmem:[%s2 + $0x40] sm:$0xff]
      %v383 = vld [vmem:[%s2 + $0x48] sm:$0xff]
      %v384 = vld [vmem:[%s2 + $0x50] sm:$0xff]
      %v385 = vld [vmem:[%s2 + $0x58] sm:$0xff]
      %v386 = vld [vmem:[%s2 + $0x60] sm:$0xff]
      %v387 = vld [vmem:[%s2 + $0x68] sm:$0xff]
      %v388 = vld [vmem:[%s2 + $0x70] sm:$0xff]
      %v389 = vld [vmem:[%s2 + $0x78] sm:$0xff]
      %v390 = vld [vmem:[%s2 + $0x80] sm:$0xff]
      %v391 = vld [vmem:[%s2 + $0x88] sm:$0xff]
      %v392 = vld [vmem:[%s2 + $0x90] sm:$0xff]
      %v393 = vld [vmem:[%s2 + $0x98] sm:$0xff]
      %v394 = vld [vmem:[%s2 + $0xa0] sm:$0xff]
      %v395 = vld [vmem:[%s2 + $0xa8] sm:$0xff]
      %v396 = vld [vmem:[%s2 + $0xb0] sm:$0xff]
      %v397 = vld [vmem:[%s2 + $0xb8] sm:$0xff]
      %v398 = vld [vmem:[%s3] sm:$0xff]
      %v399 = vld [vmem:[%s3 + $0x8] sm:$0xff]
      %v400 = vld [vmem:[%s3 + $0x10] sm:$0xff]
      %v401 = vld [vmem:[%s3 + $0x18] sm:$0xff]
      %v402 = vld [vmem:[%s3 + $0x20] sm:$0xff]
      %v403 = vld [vmem:[%s3 + $0x28] sm:$0xff]
      %v404 = vld [vmem:[%s3 + $0x30] sm:$0xff]
      %v405 = vld [vmem:[%s3 + $0x38] sm:$0xff]
      %vm406 = vcmask 261120
      %v408 = vsel %vm406, %v366, 0
      %v411 = vsel %vm406, %v367, 0
      %v414 = vsel %vm406, %v368, 0
      %v417 = vsel %vm406, %v369, 0
      %v420 = vsel %vm406, %v370, 0
      %v423 = vsel %vm406, %v371, 0
      %v426 = vsel %vm406, %v372, 0
      %v429 = vsel %vm406, %v373, 0
      %431 = vmatprep.subr.mxu0 0.0
      %432 = vmatpush1.msra.mxu0 0.0
      %433 = vmatprep.subr.mxu0 0.0
      %434 = vmatpush1.msra.mxu0 0.0
      %435 = vmatprep.subr.mxu0 0.0
      %436 = vmatpush1.msra.mxu0 0.0
      %437 = vmatprep.subr.mxu0 0.0
      %438 = vmatpush1.msra.mxu0 0.0
      %439 = vmatprep.subr.mxu0 0.0
      %440 = vmatpush1.msra.mxu0 0.0
      %441 = vmatprep.subr.mxu0 0.0
      %442 = vmatpush1.msra.mxu0 0.0
      %443 = vmatprep.subr.mxu0 0.0
      %444 = vmatpush1.msra.mxu0 0.0
      %445 = vmatprep.subr.mxu0 0.0
      %446 = vmatpush1.msra.mxu0 0.0
      %447 = vmatprep.subr.mxu0 0.0
      %448 = vmatpush1.msra.mxu0 0.0
      %449 = vmatprep.subr.mxu0 0.0
      %450 = vmatpush1.msra.mxu0 0.0
      %451 = vmatprep.subr.mxu0 0.0
      %452 = vmatpush1.msra.mxu0 0.0
      %453 = vmatprep.subr.mxu0 0.0
      %454 = vmatpush1.msra.mxu0 0.0
      %455 = vmatprep.subr.mxu0 %v405
      %456 = vmatpush1.msra.mxu0 %v404
      %457 = vmatprep.subr.mxu0 %v403
      %458 = vmatpush1.msra.mxu0 %v402
      %459 = vmatprep.subr.mxu0 %v401
      %460 = vmatpush1.msra.mxu0 %v400
      %461 = vmatprep.subr.mxu0 %v399
      %462 = vmatpush1.msra.mxu0 %v398
      %463 = vmatprep.subr.mxu0 0.0
      %464 = vmatpush2.msra.mxu0 0.0
      %465 = vmatprep.subr.mxu0 0.0
      %466 = vmatpush2.msra.mxu0 0.0
      %467 = vmatprep.subr.mxu0 0.0
      %468 = vmatpush2.msra.mxu0 0.0
      %469 = vmatprep.subr.mxu0 0.0
      %470 = vmatpush2.msra.mxu0 0.0
      %471 = vmatprep.subr.mxu0 0.0
      %472 = vmatpush2.msra.mxu0 0.0
      %473 = vmatprep.subr.mxu0 0.0
      %474 = vmatpush2.msra.mxu0 0.0
      %475 = vmatprep.subr.mxu0 0.0
      %476 = vmatpush2.msra.mxu0 0.0
      %477 = vmatprep.subr.mxu0 0.0
      %478 = vmatpush2.msra.mxu0 0.0
      %479 = vmatprep.subr.mxu0 0.0
      %480 = vmatpush2.msra.mxu0 0.0
      %481 = vmatprep.subr.mxu0 0.0
      %482 = vmatpush2.msra.mxu0 0.0
      %483 = vmatprep.subr.mxu0 0.0
      %484 = vmatpush2.msra.mxu0 0.0
      %485 = vmatprep.subr.mxu0 0.0
      %486 = vmatpush2.msra.mxu0 0.0
      %487 = vmatprep.subr.mxu0 0.0
      %488 = vmatpush2.msra.mxu0 0.0
      %489 = vmatprep.subr.mxu0 0.0
      %490 = vmatpush2.msra.mxu0 0.0
      %491 = vmatprep.subr.mxu0 0.0
      %492 = vmatpush2.msra.mxu0 0.0
      %493 = vmatprep.subr.mxu0 0.0
      %494 = vmatpush2.msra.mxu0 0.0
      %495 = vmatprep.mubr.f32.mxu0 0.0
      %496 = vmatmul.mubr.f32.gmra.mxu0 %v408
      %v497 = vpop.f32.mrf.mxu0
      %v498 = vadd.f32 0.0, %v497
      %v499 = vpop.f32.mrf.mxu0
      %v500 = vadd.f32 0.0, %v499
      %501 = vmatprep.mubr.f32.mxu0 0.0
      %502 = vmatmul.mubr.f32.gmra.mxu0 %v411
      %v503 = vpop.f32.mrf.mxu0
      %v504 = vadd.f32 0.0, %v503
      %v505 = vpop.f32.mrf.mxu0
      %v506 = vadd.f32 0.0, %v505
      %507 = vmatprep.mubr.f32.mxu0 0.0
      %508 = vmatmul.mubr.f32.gmra.mxu0 %v414
      %v509 = vpop.f32.mrf.mxu0
      %v510 = vadd.f32 0.0, %v509
      %v511 = vpop.f32.mrf.mxu0
      %v512 = vadd.f32 0.0, %v511
      %513 = vmatprep.mubr.f32.mxu0 0.0
      %514 = vmatmul.mubr.f32.gmra.mxu0 %v417
      %v515 = vpop.f32.mrf.mxu0
      %v516 = vadd.f32 0.0, %v515
      %v517 = vpop.f32.mrf.mxu0
      %v518 = vadd.f32 0.0, %v517
      %519 = vmatprep.mubr.f32.mxu0 0.0
      %520 = vmatmul.mubr.f32.gmra.mxu0 %v420
      %v521 = vpop.f32.mrf.mxu0
      %v522 = vadd.f32 0.0, %v521
      %v523 = vpop.f32.mrf.mxu0
      %v524 = vadd.f32 0.0, %v523
      %525 = vmatprep.mubr.f32.mxu0 0.0
      %526 = vmatmul.mubr.f32.gmra.mxu0 %v423
      %v527 = vpop.f32.mrf.mxu0
      %v528 = vadd.f32 0.0, %v527
      %v529 = vpop.f32.mrf.mxu0
      %v530 = vadd.f32 0.0, %v529
      %531 = vmatprep.mubr.f32.mxu0 0.0
      %532 = vmatmul.mubr.f32.gmra.mxu0 %v426
      %v533 = vpop.f32.mrf.mxu0
      %v534 = vadd.f32 0.0, %v533
      %v535 = vpop.f32.mrf.mxu0
      %v536 = vadd.f32 0.0, %v535
      %537 = vmatprep.mubr.f32.mxu0 0.0
      %538 = vmatmul.mubr.f32.gmra.mxu0 %v429
      %v539 = vpop.f32.mrf.mxu0
      %v540 = vadd.f32 0.0, %v539
      %v541 = vpop.f32.mrf.mxu0
      %v542 = vadd.f32 0.0, %v541
      %543 = vdwg.mxu0
      %vm544 = vcmask 785408
      %v546 = vsel %vm544, %v358, 0
      %v549 = vsel %vm544, %v359, 0
      %v552 = vsel %vm544, %v360, 0
      %v555 = vsel %vm544, %v361, 0
      %v558 = vsel %vm544, %v362, 0
      %v561 = vsel %vm544, %v363, 0
      %v564 = vsel %vm544, %v364, 0
      %v567 = vsel %vm544, %v365, 0
      %569 = vmatprep.subr.mxu0 0.0
      %570 = vmatpush1.msra.mxu0 0.0
      %571 = vmatprep.subr.mxu0 0.0
      %572 = vmatpush1.msra.mxu0 0.0
      %573 = vmatprep.subr.mxu0 0.0
      %574 = vmatpush1.msra.mxu0 0.0
      %575 = vmatprep.subr.mxu0 0.0
      %576 = vmatpush1.msra.mxu0 0.0
      %577 = vmatprep.subr.mxu0 %v397
      %578 = vmatpush1.msra.mxu0 %v396
      %579 = vmatprep.subr.mxu0 %v395
      %580 = vmatpush1.msra.mxu0 %v394
      %581 = vmatprep.subr.mxu0 %v393
      %582 = vmatpush1.msra.mxu0 %v392
      %583 = vmatprep.subr.mxu0 %v391
      %584 = vmatpush1.msra.mxu0 %v390
      %585 = vmatprep.subr.mxu0 %v389
      %586 = vmatpush1.msra.mxu0 %v388
      %587 = vmatprep.subr.mxu0 %v387
      %588 = vmatpush1.msra.mxu0 %v386
      %589 = vmatprep.subr.mxu0 %v385
      %590 = vmatpush1.msra.mxu0 %v384
      %591 = vmatprep.subr.mxu0 %v383
      %592 = vmatpush1.msra.mxu0 %v382
      %593 = vmatprep.subr.mxu0 %v381
      %594 = vmatpush1.msra.mxu0 %v380
      %595 = vmatprep.subr.mxu0 %v379
      %596 = vmatpush1.msra.mxu0 %v378
      %597 = vmatprep.subr.mxu0 %v377
      %598 = vmatpush1.msra.mxu0 %v376
      %599 = vmatprep.subr.mxu0 %v375
      %600 = vmatpush1.msra.mxu0 %v374
      %601 = vmatprep.subr.mxu0 0.0
      %602 = vmatpush2.msra.mxu0 0.0
      %603 = vmatprep.subr.mxu0 0.0
      %604 = vmatpush2.msra.mxu0 0.0
      %605 = vmatprep.subr.mxu0 0.0
      %606 = vmatpush2.msra.mxu0 0.0
      %607 = vmatprep.subr.mxu0 0.0
      %608 = vmatpush2.msra.mxu0 0.0
      %609 = vmatprep.subr.mxu0 0.0
      %610 = vmatpush2.msra.mxu0 0.0
      %611 = vmatprep.subr.mxu0 0.0
      %612 = vmatpush2.msra.mxu0 0.0
      %613 = vmatprep.subr.mxu0 0.0
      %614 = vmatpush2.msra.mxu0 0.0
      %615 = vmatprep.subr.mxu0 0.0
      %616 = vmatpush2.msra.mxu0 0.0
      %617 = vmatprep.subr.mxu0 0.0
      %618 = vmatpush2.msra.mxu0 0.0
      %619 = vmatprep.subr.mxu0 0.0
      %620 = vmatpush2.msra.mxu0 0.0
      %621 = vmatprep.subr.mxu0 0.0
      %622 = vmatpush2.msra.mxu0 0.0
      %623 = vmatprep.subr.mxu0 0.0
      %624 = vmatpush2.msra.mxu0 0.0
      %625 = vmatprep.subr.mxu0 0.0
      %626 = vmatpush2.msra.mxu0 0.0
      %627 = vmatprep.subr.mxu0 0.0
      %628 = vmatpush2.msra.mxu0 0.0
      %629 = vmatprep.subr.mxu0 0.0
      %630 = vmatpush2.msra.mxu0 0.0
      %631 = vmatprep.subr.mxu0 0.0
      %632 = vmatpush2.msra.mxu0 0.0
      %633 = vmatprep.mubr.f32.mxu0 0.0
      %634 = vmatmul.mubr.f32.gmra.mxu0 %v546
      %v635 = vpop.f32.mrf.mxu0
      %v636 = vadd.f32 %v498, %v635
      %v637 = vpop.f32.mrf.mxu0
      %v638 = vadd.f32 %v500, %v637
      %639 = vmatprep.mubr.f32.mxu0 0.0
      %640 = vmatmul.mubr.f32.gmra.mxu0 %v549
      %v641 = vpop.f32.mrf.mxu0
      %v642 = vadd.f32 %v504, %v641
      %v643 = vpop.f32.mrf.mxu0
      %v644 = vadd.f32 %v506, %v643
      %645 = vmatprep.mubr.f32.mxu0 0.0
      %646 = vmatmul.mubr.f32.gmra.mxu0 %v552
      %v647 = vpop.f32.mrf.mxu0
      %v648 = vadd.f32 %v510, %v647
      %v649 = vpop.f32.mrf.mxu0
      %v650 = vadd.f32 %v512, %v649
      %651 = vmatprep.mubr.f32.mxu0 0.0
      %652 = vmatmul.mubr.f32.gmra.mxu0 %v555
      %v653 = vpop.f32.mrf.mxu0
      %v654 = vadd.f32 %v516, %v653
      %v655 = vpop.f32.mrf.mxu0
      %v656 = vadd.f32 %v518, %v655
      %657 = vmatprep.mubr.f32.mxu0 0.0
      %658 = vmatmul.mubr.f32.gmra.mxu0 %v558
      %v659 = vpop.f32.mrf.mxu0
      %v660 = vadd.f32 %v522, %v659
      %v661 = vpop.f32.mrf.mxu0
      %v662 = vadd.f32 %v524, %v661
      %663 = vmatprep.mubr.f32.mxu0 0.0
      %664 = vmatmul.mubr.f32.gmra.mxu0 %v561
      %v665 = vpop.f32.mrf.mxu0
      %v666 = vadd.f32 %v528, %v665
      %v667 = vpop.f32.mrf.mxu0
      %v668 = vadd.f32 %v530, %v667
      %669 = vmatprep.mubr.f32.mxu0 0.0
      %670 = vmatmul.mubr.f32.gmra.mxu0 %v564
      %v671 = vpop.f32.mrf.mxu0
      %v672 = vadd.f32 %v534, %v671
      %v673 = vpop.f32.mrf.mxu0
      %v674 = vadd.f32 %v536, %v673
      %675 = vmatprep.mubr.f32.mxu0 0.0
      %676 = vmatmul.mubr.f32.gmra.mxu0 %v567
      %v677 = vpop.f32.mrf.mxu0
      %v678 = vadd.f32 %v540, %v677
      %v679 = vpop.f32.mrf.mxu0
      %v680 = vadd.f32 %v542, %v679
      %681 = vdwg.mxu0
      %v682 = vld [vmem:[%s4] sm:$0x3]
      %v684 = vlaneseq
      %v685 = vshrl.u32 %v684, 7
      %v686 = vsub.s32 0, %v685
      %v687 = vrot.slane %v682, %v686
      %v688 = vlaneseq
      %v689 = vshrl.u32 %v688, 7
      %v690 = vsub.s32 1, %v689
      %v691 = vrot.slane %v682, %v690
      %v694 = vadd.f32 %v636, %v687
      %v695 = vadd.f32 %v638, %v691
      %v696 = vadd.f32 %v642, %v687
      %v697 = vadd.f32 %v644, %v691
      %v698 = vadd.f32 %v648, %v687
      %v699 = vadd.f32 %v650, %v691
      %v700 = vadd.f32 %v654, %v687
      %v701 = vadd.f32 %v656, %v691
      %v702 = vadd.f32 %v660, %v687
      %v703 = vadd.f32 %v662, %v691
      %v704 = vadd.f32 %v666, %v687
      %v705 = vadd.f32 %v668, %v691
      %v706 = vadd.f32 %v672, %v687
      %v707 = vadd.f32 %v674, %v691
      %v708 = vadd.f32 %v678, %v687
      %v709 = vadd.f32 %v680, %v691
      %v710 = vmax.f32 %v694, 0.0
      %v711 = vmax.f32 %v695, 0.0
      %v712 = vmax.f32 %v696, 0.0
      %v713 = vmax.f32 %v697, 0.0
      %v714 = vmax.f32 %v698, 0.0
      %v715 = vmax.f32 %v699, 0.0
      %v716 = vmax.f32 %v700, 0.0
      %v717 = vmax.f32 %v701, 0.0
      %v718 = vmax.f32 %v702, 0.0
      %v719 = vmax.f32 %v703, 0.0
      %v720 = vmax.f32 %v704, 0.0
      %v721 = vmax.f32 %v705, 0.0
      %v722 = vmax.f32 %v706, 0.0
      %v723 = vmax.f32 %v707, 0.0
      %v724 = vmax.f32 %v708, 0.0
      %v725 = vmax.f32 %v709, 0.0
      %v726 = vld [vmem:[%s5] sm:$0xff]
      %v727 = vld [vmem:[%s5 + $0x8] sm:$0xff]
      %v728 = vld [vmem:[%s5 + $0x10] sm:$0xff]
      %v729 = vld [vmem:[%s5 + $0x18] sm:$0xff]
      %v730 = vld [vmem:[%s5 + $0x20] sm:$0xff]
      %v731 = vld [vmem:[%s5 + $0x28] sm:$0xff]
      %v732 = vld [vmem:[%s5 + $0x30] sm:$0xff]
      %v733 = vld [vmem:[%s5 + $0x38] sm:$0xff]
      %v734 = vld [vmem:[%s5 + $0x40] sm:$0xff]
      %v735 = vld [vmem:[%s5 + $0x48] sm:$0xff]
      %v736 = vld [vmem:[%s5 + $0x50] sm:$0xff]
      %v737 = vld [vmem:[%s5 + $0x58] sm:$0xff]
      %v738 = vld [vmem:[%s5 + $0x60] sm:$0xff]
      %v739 = vld [vmem:[%s5 + $0x68] sm:$0xff]
      %v740 = vld [vmem:[%s5 + $0x70] sm:$0xff]
      %v741 = vld [vmem:[%s5 + $0x78] sm:$0xff]
      %v742 = vld [vmem:[%s5 + $0x80] sm:$0xff]
      %v743 = vld [vmem:[%s5 + $0x88] sm:$0xff]
      %v744 = vld [vmem:[%s5 + $0x90] sm:$0xff]
      %v745 = vld [vmem:[%s5 + $0x98] sm:$0xff]
      %v746 = vld [vmem:[%s5 + $0xa0] sm:$0xff]
      %v747 = vld [vmem:[%s5 + $0xa8] sm:$0xff]
      %v748 = vld [vmem:[%s5 + $0xb0] sm:$0xff]
      %v749 = vld [vmem:[%s5 + $0xb8] sm:$0xff]
      %v750 = vld [vmem:[%s5 + $0xc0] sm:$0xff]
      %v751 = vld [vmem:[%s5 + $0xc8] sm:$0xff]
      %v752 = vld [vmem:[%s5 + $0xd0] sm:$0xff]
      %v753 = vld [vmem:[%s5 + $0xd8] sm:$0xff]
      %v754 = vld [vmem:[%s5 + $0xe0] sm:$0xff]
      %v755 = vld [vmem:[%s5 + $0xe8] sm:$0xff]
      %v756 = vld [vmem:[%s5 + $0xf0] sm:$0xff]
      %v757 = vld [vmem:[%s5 + $0xf8] sm:$0xff]
      %v758 = vld [vmem:[%s5 + $0x100] sm:$0xff]
      %v759 = vld [vmem:[%s5 + $0x108] sm:$0xff]
      %v760 = vld [vmem:[%s5 + $0x110] sm:$0xff]
      %v761 = vld [vmem:[%s5 + $0x118] sm:$0xff]
      %v762 = vld [vmem:[%s5 + $0x120] sm:$0xff]
      %v763 = vld [vmem:[%s5 + $0x128] sm:$0xff]
      %v764 = vld [vmem:[%s5 + $0x130] sm:$0xff]
      %v765 = vld [vmem:[%s5 + $0x138] sm:$0xff]
      %v766 = vld [vmem:[%s5 + $0x140] sm:$0xff]
      %v767 = vld [vmem:[%s5 + $0x148] sm:$0xff]
      %v768 = vld [vmem:[%s5 + $0x150] sm:$0xff]
      %v769 = vld [vmem:[%s5 + $0x158] sm:$0xff]
      %v770 = vld [vmem:[%s5 + $0x160] sm:$0xff]
      %v771 = vld [vmem:[%s5 + $0x168] sm:$0xff]
      %v772 = vld [vmem:[%s5 + $0x170] sm:$0xff]
      %v773 = vld [vmem:[%s5 + $0x178] sm:$0xff]
      %v774 = vld [vmem:[%s5 + $0x180] sm:$0xff]
      %v775 = vld [vmem:[%s5 + $0x188] sm:$0xff]
      %v776 = vld [vmem:[%s5 + $0x190] sm:$0xff]
      %v777 = vld [vmem:[%s5 + $0x198] sm:$0xff]
      %v778 = vld [vmem:[%s5 + $0x1a0] sm:$0xff]
      %v779 = vld [vmem:[%s5 + $0x1a8] sm:$0xff]
      %v780 = vld [vmem:[%s5 + $0x1b0] sm:$0xff]
      %v781 = vld [vmem:[%s5 + $0x1b8] sm:$0xff]
      %v782 = vld [vmem:[%s5 + $0x1c0] sm:$0xff]
      %v783 = vld [vmem:[%s5 + $0x1c8] sm:$0xff]
      %v784 = vld [vmem:[%s5 + $0x1d0] sm:$0xff]
      %v785 = vld [vmem:[%s5 + $0x1d8] sm:$0xff]
      %v786 = vld [vmem:[%s5 + $0x1e0] sm:$0xff]
      %v787 = vld [vmem:[%s5 + $0x1e8] sm:$0xff]
      %v788 = vld [vmem:[%s5 + $0x1f0] sm:$0xff]
      %v789 = vld [vmem:[%s5 + $0x1f8] sm:$0xff]
      %v790 = vld [vmem:[%s6] sm:$0x3]
      %v792 = vlaneseq
      %v793 = vshrl.u32 %v792, 7
      %v794 = vsub.s32 0, %v793
      %v795 = vrot.slane %v790, %v794
      %v796 = vlaneseq
      %v797 = vshrl.u32 %v796, 7
      %v798 = vsub.s32 1, %v797
      %v799 = vrot.slane %v790, %v798
      %802 = vmatprep.subr.mxu0 %v757
      %803 = vmatpush1.msra.mxu0 %v756
      %804 = vmatprep.subr.mxu0 %v755
      %805 = vmatpush1.msra.mxu0 %v754
      %806 = vmatprep.subr.mxu0 %v753
      %807 = vmatpush1.msra.mxu0 %v752
      %808 = vmatprep.subr.mxu0 %v751
      %809 = vmatpush1.msra.mxu0 %v750
      %810 = vmatprep.subr.mxu0 %v749
      %811 = vmatpush1.msra.mxu0 %v748
      %812 = vmatprep.subr.mxu0 %v747
      %813 = vmatpush1.msra.mxu0 %v746
      %814 = vmatprep.subr.mxu0 %v745
      %815 = vmatpush1.msra.mxu0 %v744
      %816 = vmatprep.subr.mxu0 %v743
      %817 = vmatpush1.msra.mxu0 %v742
      %818 = vmatprep.subr.mxu0 %v741
      %819 = vmatpush1.msra.mxu0 %v740
      %820 = vmatprep.subr.mxu0 %v739
      %821 = vmatpush1.msra.mxu0 %v738
      %822 = vmatprep.subr.mxu0 %v737
      %823 = vmatpush1.msra.mxu0 %v736
      %824 = vmatprep.subr.mxu0 %v735
      %825 = vmatpush1.msra.mxu0 %v734
      %826 = vmatprep.subr.mxu0 %v733
      %827 = vmatpush1.msra.mxu0 %v732
      %828 = vmatprep.subr.mxu0 %v731
      %829 = vmatpush1.msra.mxu0 %v730
      %830 = vmatprep.subr.mxu0 %v729
      %831 = vmatpush1.msra.mxu0 %v728
      %832 = vmatprep.subr.mxu0 %v727
      %833 = vmatpush1.msra.mxu0 %v726
      %834 = vmatprep.subr.mxu0 %v789
      %835 = vmatpush2.msra.mxu0 %v788
      %836 = vmatprep.subr.mxu0 %v787
      %837 = vmatpush2.msra.mxu0 %v786
      %838 = vmatprep.subr.mxu0 %v785
      %839 = vmatpush2.msra.mxu0 %v784
      %840 = vmatprep.subr.mxu0 %v783
      %841 = vmatpush2.msra.mxu0 %v782
      %842 = vmatprep.subr.mxu0 %v781
      %843 = vmatpush2.msra.mxu0 %v780
      %844 = vmatprep.subr.mxu0 %v779
      %845 = vmatpush2.msra.mxu0 %v778
      %846 = vmatprep.subr.mxu0 %v777
      %847 = vmatpush2.msra.mxu0 %v776
      %848 = vmatprep.subr.mxu0 %v775
      %849 = vmatpush2.msra.mxu0 %v774
      %850 = vmatprep.subr.mxu0 %v773
      %851 = vmatpush2.msra.mxu0 %v772
      %852 = vmatprep.subr.mxu0 %v771
      %853 = vmatpush2.msra.mxu0 %v770
      %854 = vmatprep.subr.mxu0 %v769
      %855 = vmatpush2.msra.mxu0 %v768
      %856 = vmatprep.subr.mxu0 %v767
      %857 = vmatpush2.msra.mxu0 %v766
      %858 = vmatprep.subr.mxu0 %v765
      %859 = vmatpush2.msra.mxu0 %v764
      %860 = vmatprep.subr.mxu0 %v763
      %861 = vmatpush2.msra.mxu0 %v762
      %862 = vmatprep.subr.mxu0 %v761
      %863 = vmatpush2.msra.mxu0 %v760
      %864 = vmatprep.subr.mxu0 %v759
      %865 = vmatpush2.msra.mxu0 %v758
      %866 = vmatprep.mubr.f32.mxu0 %v711
      %867 = vmatmul.mubr.f32.gmra.mxu0 %v710
      %v868 = vpop.f32.mrf.mxu0
      %v869 = vadd.f32 %v795, %v868
      %v870 = vpop.f32.mrf.mxu0
      %v871 = vadd.f32 %v799, %v870
      %872 = vmatprep.mubr.f32.mxu0 %v713
      %873 = vmatmul.mubr.f32.gmra.mxu0 %v712
      %v874 = vpop.f32.mrf.mxu0
      %v875 = vadd.f32 %v795, %v874
      %v876 = vpop.f32.mrf.mxu0
      %v877 = vadd.f32 %v799, %v876
      %878 = vmatprep.mubr.f32.mxu0 %v715
      %879 = vmatmul.mubr.f32.gmra.mxu0 %v714
      %v880 = vpop.f32.mrf.mxu0
      %v881 = vadd.f32 %v795, %v880
      %v882 = vpop.f32.mrf.mxu0
      %v883 = vadd.f32 %v799, %v882
      %884 = vmatprep.mubr.f32.mxu0 %v717
      %885 = vmatmul.mubr.f32.gmra.mxu0 %v716
      %v886 = vpop.f32.mrf.mxu0
      %v887 = vadd.f32 %v795, %v886
      %v888 = vpop.f32.mrf.mxu0
      %v889 = vadd.f32 %v799, %v888
      %890 = vmatprep.mubr.f32.mxu0 %v719
      %891 = vmatmul.mubr.f32.gmra.mxu0 %v718
      %v892 = vpop.f32.mrf.mxu0
      %v893 = vadd.f32 %v795, %v892
      %v894 = vpop.f32.mrf.mxu0
      %v895 = vadd.f32 %v799, %v894
      %896 = vmatprep.mubr.f32.mxu0 %v721
      %897 = vmatmul.mubr.f32.gmra.mxu0 %v720
      %v898 = vpop.f32.mrf.mxu0
      %v899 = vadd.f32 %v795, %v898
      %v900 = vpop.f32.mrf.mxu0
      %v901 = vadd.f32 %v799, %v900
      %902 = vmatprep.mubr.f32.mxu0 %v723
      %903 = vmatmul.mubr.f32.gmra.mxu0 %v722
      %v904 = vpop.f32.mrf.mxu0
      %v905 = vadd.f32 %v795, %v904
      %v906 = vpop.f32.mrf.mxu0
      %v907 = vadd.f32 %v799, %v906
      %908 = vmatprep.mubr.f32.mxu0 %v725
      %909 = vmatmul.mubr.f32.gmra.mxu0 %v724
      %v910 = vpop.f32.mrf.mxu0
      %v911 = vadd.f32 %v795, %v910
      %v912 = vpop.f32.mrf.mxu0
      %v913 = vadd.f32 %v799, %v912
      %914 = vdwg.mxu0
      %v915 = vmax.f32 %v869, 0.0
      %v916 = vmax.f32 %v871, 0.0
      %v917 = vmax.f32 %v875, 0.0
      %v918 = vmax.f32 %v877, 0.0
      %v919 = vmax.f32 %v881, 0.0
      %v920 = vmax.f32 %v883, 0.0
      %v921 = vmax.f32 %v887, 0.0
      %v922 = vmax.f32 %v889, 0.0
      %v923 = vmax.f32 %v893, 0.0
      %v924 = vmax.f32 %v895, 0.0
      %v925 = vmax.f32 %v899, 0.0
      %v926 = vmax.f32 %v901, 0.0
      %v927 = vmax.f32 %v905, 0.0
      %v928 = vmax.f32 %v907, 0.0
      %v929 = vmax.f32 %v911, 0.0
      %v930 = vmax.f32 %v913, 0.0
      %v931 = vld [vmem:[%s7] sm:$0xff]
      %v932 = vld [vmem:[%s7 + $0x8] sm:$0xff]
      %v933 = vld [vmem:[%s7 + $0x10] sm:$0xff]
      %v934 = vld [vmem:[%s7 + $0x18] sm:$0xff]
      %v935 = vld [vmem:[%s7 + $0x20] sm:$0xff]
      %v936 = vld [vmem:[%s7 + $0x28] sm:$0xff]
      %v937 = vld [vmem:[%s7 + $0x30] sm:$0xff]
      %v938 = vld [vmem:[%s7 + $0x38] sm:$0xff]
      %v939 = vld [vmem:[%s7 + $0x40] sm:$0xff]
      %v940 = vld [vmem:[%s7 + $0x48] sm:$0xff]
      %v941 = vld [vmem:[%s7 + $0x50] sm:$0xff]
      %v942 = vld [vmem:[%s7 + $0x58] sm:$0xff]
      %v943 = vld [vmem:[%s7 + $0x60] sm:$0xff]
      %v944 = vld [vmem:[%s7 + $0x68] sm:$0xff]
      %v945 = vld [vmem:[%s7 + $0x70] sm:$0xff]
      %v946 = vld [vmem:[%s7 + $0x78] sm:$0xff]
      %v947 = vld [vmem:[%s7 + $0x80] sm:$0xff]
      %v948 = vld [vmem:[%s7 + $0x88] sm:$0xff]
      %v949 = vld [vmem:[%s7 + $0x90] sm:$0xff]
      %v950 = vld [vmem:[%s7 + $0x98] sm:$0xff]
      %v951 = vld [vmem:[%s7 + $0xa0] sm:$0xff]
      %v952 = vld [vmem:[%s7 + $0xa8] sm:$0xff]
      %v953 = vld [vmem:[%s7 + $0xb0] sm:$0xff]
      %v954 = vld [vmem:[%s7 + $0xb8] sm:$0xff]
      %v955 = vld [vmem:[%s7 + $0xc0] sm:$0xff]
      %v956 = vld [vmem:[%s7 + $0xc8] sm:$0xff]
      %v957 = vld [vmem:[%s7 + $0xd0] sm:$0xff]
      %v958 = vld [vmem:[%s7 + $0xd8] sm:$0xff]
      %v959 = vld [vmem:[%s7 + $0xe0] sm:$0xff]
      %v960 = vld [vmem:[%s7 + $0xe8] sm:$0xff]
      %v961 = vld [vmem:[%s7 + $0xf0] sm:$0xff]
      %v962 = vld [vmem:[%s7 + $0xf8] sm:$0xff]
      %v963 = vld [vmem:[%s8] sm:$0x1]
      %v965 = vlaneseq
      %v966 = vshrl.u32 %v965, 7
      %v967 = vsub.s32 0, %v966
      %v968 = vrot.slane %v963, %v967
      %970 = vmatprep.subr.mxu0 0.0
      %971 = vmatpush1.msra.mxu0 %v946
      %972 = vmatprep.subr.mxu0 0.0
      %973 = vmatpush1.msra.mxu0 %v945
      %974 = vmatprep.subr.mxu0 0.0
      %975 = vmatpush1.msra.mxu0 %v944
      %976 = vmatprep.subr.mxu0 0.0
      %977 = vmatpush1.msra.mxu0 %v943
      %978 = vmatprep.subr.mxu0 0.0
      %979 = vmatpush1.msra.mxu0 %v942
      %980 = vmatprep.subr.mxu0 0.0
      %981 = vmatpush1.msra.mxu0 %v941
      %982 = vmatprep.subr.mxu0 0.0
      %983 = vmatpush1.msra.mxu0 %v940
      %984 = vmatprep.subr.mxu0 0.0
      %985 = vmatpush1.msra.mxu0 %v939
      %986 = vmatprep.subr.mxu0 0.0
      %987 = vmatpush1.msra.mxu0 %v938
      %988 = vmatprep.subr.mxu0 0.0
      %989 = vmatpush1.msra.mxu0 %v937
      %990 = vmatprep.subr.mxu0 0.0
      %991 = vmatpush1.msra.mxu0 %v936
      %992 = vmatprep.subr.mxu0 0.0
      %993 = vmatpush1.msra.mxu0 %v935
      %994 = vmatprep.subr.mxu0 0.0
      %995 = vmatpush1.msra.mxu0 %v934
      %996 = vmatprep.subr.mxu0 0.0
      %997 = vmatpush1.msra.mxu0 %v933
      %998 = vmatprep.subr.mxu0 0.0
      %999 = vmatpush1.msra.mxu0 %v932
      %1000 = vmatprep.subr.mxu0 0.0
      %1001 = vmatpush1.msra.mxu0 %v931
      %1002 = vmatprep.subr.mxu0 0.0
      %1003 = vmatpush2.msra.mxu0 %v962
      %1004 = vmatprep.subr.mxu0 0.0
      %1005 = vmatpush2.msra.mxu0 %v961
      %1006 = vmatprep.subr.mxu0 0.0
      %1007 = vmatpush2.msra.mxu0 %v960
      %1008 = vmatprep.subr.mxu0 0.0
      %1009 = vmatpush2.msra.mxu0 %v959
      %1010 = vmatprep.subr.mxu0 0.0
      %1011 = vmatpush2.msra.mxu0 %v958
      %1012 = vmatprep.subr.mxu0 0.0
      %1013 = vmatpush2.msra.mxu0 %v957
      %1014 = vmatprep.subr.mxu0 0.0
      %1015 = vmatpush2.msra.mxu0 %v956
      %1016 = vmatprep.subr.mxu0 0.0
      %1017 = vmatpush2.msra.mxu0 %v955
      %1018 = vmatprep.subr.mxu0 0.0
      %1019 = vmatpush2.msra.mxu0 %v954
      %1020 = vmatprep.subr.mxu0 0.0
      %1021 = vmatpush2.msra.mxu0 %v953
      %1022 = vmatprep.subr.mxu0 0.0
      %1023 = vmatpush2.msra.mxu0 %v952
      %1024 = vmatprep.subr.mxu0 0.0
      %1025 = vmatpush2.msra.mxu0 %v951
      %1026 = vmatprep.subr.mxu0 0.0
      %1027 = vmatpush2.msra.mxu0 %v950
      %1028 = vmatprep.subr.mxu0 0.0
      %1029 = vmatpush2.msra.mxu0 %v949
      %1030 = vmatprep.subr.mxu0 0.0
      %1031 = vmatpush2.msra.mxu0 %v948
      %1032 = vmatprep.subr.mxu0 0.0
      %1033 = vmatpush2.msra.mxu0 %v947
      %1034 = vmatprep.mubr.f32.mxu0 %v916
      %1035 = vmatmul.mubr.f32.gmra.mxu0 %v915
      %v1036 = vpop.f32.mrf.mxu0
      %v1037 = vadd.f32 %v968, %v1036
      %v1038 = vpop.f32.mrf.mxu0
      %1039 = vmatprep.mubr.f32.mxu0 %v918
      %1040 = vmatmul.mubr.f32.gmra.mxu0 %v917
      %v1041 = vpop.f32.mrf.mxu0
      %v1042 = vadd.f32 %v968, %v1041
      %v1043 = vpop.f32.mrf.mxu0
      %1044 = vmatprep.mubr.f32.mxu0 %v920
      %1045 = vmatmul.mubr.f32.gmra.mxu0 %v919
      %v1046 = vpop.f32.mrf.mxu0
      %v1047 = vadd.f32 %v968, %v1046
      %v1048 = vpop.f32.mrf.mxu0
      %1049 = vmatprep.mubr.f32.mxu0 %v922
      %1050 = vmatmul.mubr.f32.gmra.mxu0 %v921
      %v1051 = vpop.f32.mrf.mxu0
      %v1052 = vadd.f32 %v968, %v1051
      %v1053 = vpop.f32.mrf.mxu0
      %1054 = vmatprep.mubr.f32.mxu0 %v924
      %1055 = vmatmul.mubr.f32.gmra.mxu0 %v923
      %v1056 = vpop.f32.mrf.mxu0
      %v1057 = vadd.f32 %v968, %v1056
      %v1058 = vpop.f32.mrf.mxu0
      %1059 = vmatprep.mubr.f32.mxu0 %v926
      %1060 = vmatmul.mubr.f32.gmra.mxu0 %v925
      %v1061 = vpop.f32.mrf.mxu0
      %v1062 = vadd.f32 %v968, %v1061
      %v1063 = vpop.f32.mrf.mxu0
      %1064 = vmatprep.mubr.f32.mxu0 %v928
      %1065 = vmatmul.mubr.f32.gmra.mxu0 %v927
      %v1066 = vpop.f32.mrf.mxu0
      %v1067 = vadd.f32 %v968, %v1066
      %v1068 = vpop.f32.mrf.mxu0
      %1069 = vmatprep.mubr.f32.mxu0 %v930
      %1070 = vmatmul.mubr.f32.gmra.mxu0 %v929
      %v1071 = vpop.f32.mrf.mxu0
      %v1072 = vadd.f32 %v968, %v1071
      %v1073 = vpop.f32.mrf.mxu0
      %1074 = vdwg.mxu0
      %1075 = vst [vmem:[%s356] sm:$0xff] %v1037
      %1076 = vst [vmem:[%s356 + $0x8] sm:$0xff] %v1042
      %1077 = vst [vmem:[%s356 + $0x10] sm:$0xff] %v1047
      %1078 = vst [vmem:[%s356 + $0x18] sm:$0xff] %v1052
      %1079 = vst [vmem:[%s356 + $0x20] sm:$0xff] %v1057
      %1080 = vst [vmem:[%s356 + $0x28] sm:$0xff] %v1062
      %1081 = vst [vmem:[%s356 + $0x30] sm:$0xff] %v1067
      %1082 = vst [vmem:[%s356 + $0x38] sm:$0xff] %v1072
      %s1083 = smul.u32 8, %s20
      %p1084 = scmp.lt.s32.totalorder %s1083, 15
      %s1085 = scalar_select %p1084, %s1083, 15
      %s1086 = smul.addr %s1085, 8
      %s1087 = scalar_lea.vmem %s9, %s1086
      // Predicated region
      $region57: #{phi_forward.1} parent=55 // pred_check
        %p1088 = pneg %p237
      $region58: #{phi_forward.1} parent=55 // pred_check_branch
        %1090 = sbr.rel (%p1088) target = $region60
      $region59: #{phi_forward.1} parent=55 // pred_region
        %s1091 = smul.u32 8, %s20
      $region60: #{phi_forward.1} parent=55 // pred_fallthru
        _
    $region56: #{phi_forward.1} parent=5 // pred_fallthru
      _
    %p1092 = scmp.le.s32.totalorder 2, %s15
    // Predicated region
    $region61: #{phi_forward.1} parent=5 // pred_check
      %p1093 = pneg %p1092
    $region62: #{phi_forward.1} parent=5 // pred_check_branch
      %1095 = sbr.rel (%p1093) target = $region64
    $region63: #{phi_forward.1} parent=5 // pred_region
      %s1096 = ssub.s32 %s15, 2
      // Predicated region
      $region65: #{phi_forward.1} parent=63 // pred_check
        %p1097 = pneg %p243
      $region66: #{phi_forward.1} parent=63 // pred_check_branch
        %1099 = sbr.rel (%p1097) target = $region68
      $region67: #{phi_forward.1} parent=63 // pred_region
        %s1100 = smul.u32 8, %s21
        %p1101 = scmp.lt.s32.totalorder %s1100, 15
        %s1102 = scalar_select %p1101, %s1100, 15
        %s1103 = smul.addr %s1102, 8
        %s1104 = scalar_lea.vmem %s9, %s1103
      $region68: #{phi_forward.1} parent=63 // pred_fallthru
        _
    $region64: #{phi_forward.1} parent=5 // pred_fallthru
      _
  $region6: #{phi_forward.1} parent=0 // loop_footer
    %s19 = sadd.s32 1, %s15
  $region7: #{phi_forward.1} parent=0 // loop_footer_branch
    %14 = sbr.rel target = $region3
  $region8: #{phi_forward.1} parent=0 // loop_exit
    _

</llo_original>
